<compile_context>
chip_gen: v7x
topology: tpu7x:2x2x1
jax: 0.10.0
libtpu: 0.0.40
codegen_flags: <defaults>
</compile_context>

<pallas_src>
import functools

import jax
import jax.numpy as jnp
import numpy as np
from jax.experimental import pallas as pl
from jax.experimental.pallas import tpu as pltpu

EPS = 1e-8


def _round_up(x, m):
    return ((x + m - 1) // m) * m


# ----------------------------------------------------------------------------
# Fused single-read path: grid=(M,), whole (N, K) slab resident per batch.
# ----------------------------------------------------------------------------
def _fused_kernel(y_ref, g_ref, b_ref, o_ref, *, eps, inv_count):
    # y_ref: (1, N, K)   g_ref/b_ref: (N, 1)   o_ref: (1, N, K)
    y = y_ref[0].astype(jnp.float32)                       # (N, K)
    s = jnp.sum(y)
    q = jnp.sum(y * y)
    mean = s * inv_count
    var = jnp.maximum(q * inv_count - mean * mean, 0.0)
    inv_std = 1.0 / jnp.sqrt(var + eps)
    scale = g_ref[...] * inv_std                           # (N, 1)
    shift = b_ref[...] - mean * scale                      # (N, 1)
    o_ref[0] = (y * scale + shift).astype(o_ref.dtype)


# ----------------------------------------------------------------------------
# Two-pass fallback, pass 1: per-batch sum / sum-of-squares over (N, K).
# ----------------------------------------------------------------------------
def _stats_kernel(y_ref, stats_ref, sacc_ref, qacc_ref, *,
                  k_total, tk, chunk, mask_tail):
    # y_ref    : (1, N, tk)    input tile (last tile may read OOB -> masked)
    # stats_ref: (1, 2, chunk) per-m blocked VMEM output of lane-partial sums
    # sacc/qacc: (N, chunk)    VMEM lane-parallel accumulators
    k = pl.program_id(1)

    @pl.when(k == 0)
    def _init():
        sacc_ref[...] = jnp.zeros_like(sacc_ref)
        qacc_ref[...] = jnp.zeros_like(qacc_ref)

    y = y_ref[0].astype(jnp.float32)                       # (N, tk)
    if mask_tail:
        rem = k_total - k * tk                             # valid lanes in tile
        col = jax.lax.broadcasted_iota(jnp.int32, y.shape, 1)
        y = jnp.where(col < rem, y, 0.0)

    s_part = sacc_ref[...]
    q_part = qacc_ref[...]
    for j in range(tk // chunk):                           # vreg-aligned slices
        c = y[:, j * chunk:(j + 1) * chunk]
        s_part = s_part + c
        q_part = q_part + c * c
    sacc_ref[...] = s_part
    qacc_ref[...] = q_part

    @pl.when(k == pl.num_programs(1) - 1)
    def _finalize():
        stats_ref[0, 0:1, :] = jnp.sum(sacc_ref[...], axis=0, keepdims=True)
        stats_ref[0, 1:2, :] = jnp.sum(qacc_ref[...], axis=0, keepdims=True)


# ----------------------------------------------------------------------------
# Two-pass fallback, pass 2: out = y * scale + shift (lane-dense writes).
# ----------------------------------------------------------------------------
def _norm_kernel(scale_ref, shift_ref, y_ref, o_ref):
    # scale/shift: (1, N, 1) per-(m, channel)    y/o: (1, N, tk)
    y = y_ref[0].astype(jnp.float32)
    o_ref[0] = (y * scale_ref[0] + shift_ref[0]).astype(o_ref.dtype)


def global_layer_norm(y, gamma, beta, *, eps=EPS, max_tk=8192,
                      fused_limit_bytes=4 << 20):
    """Global layer norm forward.  y: (M, N, K); gamma/beta broadcastable to (1, N, 1)."""
    M, N, K = y.shape
    g = jnp.asarray(gamma, jnp.float32).reshape(N, 1)
    b = jnp.asarray(beta, jnp.float32).reshape(N, 1)
    inv_count = 1.0 / float(N * K)
    y_bytes = M * N * K * y.dtype.itemsize

    # ---------------- Fused single-read path ----------------
    if N * K * 4 <= fused_limit_bytes:
        kern = functools.partial(_fused_kernel, eps=float(eps), inv_count=inv_count)
        return pl.pallas_call(
            kern,
            out_shape=jax.ShapeDtypeStruct((M, N, K), y.dtype),
            grid_spec=pltpu.PrefetchScalarGridSpec(
                num_scalar_prefetch=0,
                grid=(M,),
                in_specs=[
                    pl.BlockSpec((1, N, K), lambda m: (m, 0, 0)),
                    pl.BlockSpec((N, 1), lambda m: (0, 0)),
                    pl.BlockSpec((N, 1), lambda m: (0, 0)),
                ],
                out_specs=pl.BlockSpec((1, N, K), lambda m: (m, 0, 0)),
            ),
            compiler_params=pltpu.CompilerParams(
                dimension_semantics=("parallel",),
                vmem_limit_bytes=40 << 20),
            cost_estimate=pl.CostEstimate(
                flops=6 * M * N * K, transcendentals=M,
                bytes_accessed=2 * y_bytes),
        )(y, g, b)

    # ---------------- Two-pass fallback ----------------
    # Lane-aligned K tile sized to ~4 MiB (f32-equivalent) per block.
    tk_cap = max(128, ((4 << 20) // (4 * N)) // 128 * 128)
    tk = min(tk_cap, max(128, (int(max_tk) // 128) * 128))
    if tk >= K:
        tk = K                       # single full-K tile (block == full dim)
    n_kt = pl.cdiv(K, tk)
    mask_tail = (K % tk) != 0
    chunk = 128 if tk % 128 == 0 else tk   # lane-accumulator width

    # Pass 1: lane-parallel partial sums, reduced over channels at finalize.
    stats = pl.pallas_call(
        functools.partial(_stats_kernel, k_total=K, tk=tk, chunk=chunk,
                          mask_tail=mask_tail),
        out_shape=jax.ShapeDtypeStruct((M, 2, chunk), jnp.float32),
        grid_spec=pltpu.PrefetchScalarGridSpec(
            num_scalar_prefetch=0,
            grid=(M, n_kt),
            in_specs=[pl.BlockSpec((1, N, tk), lambda m, k: (m, 0, k))],
            out_specs=pl.BlockSpec((1, 2, chunk), lambda m, k: (m, 0, 0)),
            scratch_shapes=[pltpu.VMEM((N, chunk), jnp.float32),
                            pltpu.VMEM((N, chunk), jnp.float32)],
        ),
        compiler_params=pltpu.CompilerParams(
            dimension_semantics=("parallel", "arbitrary"),
            vmem_limit_bytes=32 << 20),
        cost_estimate=pl.CostEstimate(
            flops=3 * M * N * K, transcendentals=0,
            bytes_accessed=y_bytes + M * 2 * chunk * 4),
    )(y)

    # Finalize statistics + fold affine into per-(m, channel) scale / shift.
    sums = jnp.sum(stats, axis=2)                         # (M, 2)
    mean = sums[:, 0] * inv_count                         # (M,)
    var = jnp.maximum(sums[:, 1] * inv_count - mean * mean, 0.0)
    inv_std = 1.0 / jnp.sqrt(var + eps)
    scale = inv_std[:, None] * g[None, :, 0]              # (M, N)
    shift = b[None, :, 0] - mean[:, None] * scale         # (M, N)
    scale = scale[:, :, None].astype(jnp.float32)         # (M, N, 1)
    shift = shift[:, :, None].astype(jnp.float32)         # (M, N, 1)

    # Pass 2: normalize + affine, lane-dense output tiles (no padding/slicing).
    out = pl.pallas_call(
        _norm_kernel,
        out_shape=jax.ShapeDtypeStruct((M, N, K), y.dtype),
        grid_spec=pltpu.PrefetchScalarGridSpec(
            num_scalar_prefetch=0,
            grid=(M, n_kt),
            in_specs=[
                pl.BlockSpec((1, N, 1), lambda m, k: (m, 0, 0)),
                pl.BlockSpec((1, N, 1), lambda m, k: (m, 0, 0)),
                pl.BlockSpec((1, N, tk), lambda m, k: (m, 0, k)),
            ],
            out_specs=pl.BlockSpec((1, N, tk), lambda m, k: (m, 0, k)),
        ),
        compiler_params=pltpu.CompilerParams(
            dimension_semantics=("parallel", "arbitrary"),
            vmem_limit_bytes=32 << 20),
        cost_estimate=pl.CostEstimate(
            flops=2 * M * N * K, transcendentals=0,
            bytes_accessed=2 * y_bytes),
    )(scale, shift, y)
    return out


def _reference_gln(y, gamma, beta, eps=EPS):
    # Mirrors the PyTorch forward exactly.
    mean = jnp.mean(y, axis=1, keepdims=True)
    mean = jnp.mean(mean, axis=2, keepdims=True)
    var = jnp.mean((y - mean) ** 2, axis=1, keepdims=True)
    var = jnp.mean(var, axis=2, keepdims=True)
    return gamma * (y - mean) / jnp.sqrt(var + eps) + beta


if __name__ == "__main__":
    key = jax.random.PRNGKey(0)
    k1, k2, k3, k4, k5, k6, k7 = jax.random.split(key, 7)

    # Case 1: reset_parameters() init (gamma=1, beta=0), tiny K -> fused path.
    M1, N1, K1 = 2, 32, 16
    y1 = jax.random.normal(k1, (M1, N1, K1), dtype=jnp.float32)
    g1 = jnp.ones((1, N1, 1), jnp.float32)
    b1 = jnp.zeros((1, N1, 1), jnp.float32)
    out1 = jax.block_until_ready(global_layer_norm(y1, g1, b1))
    np.testing.assert_allclose(np.asarray(out1), np.asarray(_reference_gln(y1, g1, b1)),
                               rtol=1e-5, atol=1e-5)
    assert out1.shape == (M1, N1, K1), out1.shape

    # Case 2: ragged K + non-trivial affine; force the two-pass path with
    # multiple K tiles so the masked grid reduction and the partial boundary
    # write are exercised.
    M2, N2, K2 = 2, 24, 200
    y2 = jax.random.normal(k2, (M2, N2, K2), dtype=jnp.float32)
    g2 = 1.0 + 0.1 * jax.random.normal(k3, (1, N2, 1), dtype=jnp.float32)
    b2 = 0.1 * jax.random.normal(k4, (1, N2, 1), dtype=jnp.float32)
    out2 = jax.block_until_ready(
        global_layer_norm(y2, g2, b2, max_tk=128, fused_limit_bytes=0))
    np.testing.assert_allclose(np.asarray(out2), np.asarray(_reference_gln(y2, g2, b2)),
                               rtol=1e-5, atol=1e-5)
    assert out2.shape == (M2, N2, K2), out2.shape

    # Case 3: fused path with non-trivial affine, lane-aligned K, N % 8 != 0.
    M3, N3, K3 = 2, 40, 384
    y3 = 0.5 + jax.random.normal(k5, (M3, N3, K3), dtype=jnp.float32)
    g3 = 1.0 + 0.1 * jax.random.normal(k6, (1, N3, 1), dtype=jnp.float32)
    b3 = 0.1 * jax.random.normal(k7, (1, N3, 1), dtype=jnp.float32)
    out3 = jax.block_until_ready(global_layer_norm(y3, g3, b3))
    np.testing.assert_allclose(np.asarray(out3), np.asarray(_reference_gln(y3, g3, b3)),
                               rtol=1e-5, atol=1e-5)
    assert out3.shape == (M3, N3, K3), out3.shape

    print("KERNEL_OK")
</pallas_src>

<mosaic_0001>
module attributes {stable_mosaic.version = 11 : i64} {
  func.func @_fused_kernel(%arg0: i32, %arg1: memref<1x32x16xf32, #tpu.memory_space<vmem>>, %arg2: memref<32x1xf32, #tpu.memory_space<vmem>>, %arg3: memref<32x1xf32, #tpu.memory_space<vmem>>, %arg4: memref<1x32x16xf32, #tpu.memory_space<vmem>>) attributes {dimension_semantics = [#tpu.dimension_semantics<parallel>], iteration_bounds = array<i64: 2>, scalar_prefetch = 0 : i64, scratch_operands = 0 : i64, tpu.core_type = #tpu.core_type<tc>, window_params = [{transform_indices = @transform_0, window_bounds = array<i64: 1, 32, 16>}, {pipeline_mode = #tpu.pipeline_mode<synchronous>, transform_indices = @transform_1, window_bounds = array<i64: 32, 1>}, {pipeline_mode = #tpu.pipeline_mode<synchronous>, transform_indices = @transform_2, window_bounds = array<i64: 32, 1>}, {transform_indices = @transform_3, window_bounds = array<i64: 1, 32, 16>}]} {
    %c0 = arith.constant 0 : index
    %c0_0 = arith.constant 0 : index
    %c0_1 = arith.constant 0 : index
    %0 = vector.load %arg1[%c0, %c0_0, %c0_1] : memref<1x32x16xf32, #tpu.memory_space<vmem>>, vector<1x32x16xf32>
    %1 = vector.shape_cast %0 : vector<1x32x16xf32> to vector<32x16xf32>
    %2 = vector.shape_cast %1 : vector<32x16xf32> to vector<1x32x16xf32>
    %cst = arith.constant dense<0.000000e+00> : vector<1xf32>
    %3 = vector.multi_reduction <add>, %2, %cst [1, 2] : vector<1x32x16xf32> to vector<1xf32>
    %4 = vector.shape_cast %3 : vector<1xf32> to vector<1x1x1xf32>
    %5 = vector.extract %4[0, 0, 0] : f32 from vector<1x1x1xf32>
    %6 = arith.mulf %1, %1 : vector<32x16xf32>
    %7 = vector.shape_cast %6 : vector<32x16xf32> to vector<1x32x16xf32>
    %cst_2 = arith.constant dense<0.000000e+00> : vector<1xf32>
    %8 = vector.multi_reduction <add>, %7, %cst_2 [1, 2] : vector<1x32x16xf32> to vector<1xf32>
    %9 = vector.shape_cast %8 : vector<1xf32> to vector<1x1x1xf32>
    %10 = vector.extract %9[0, 0, 0] : f32 from vector<1x1x1xf32>
    %cst_3 = arith.constant 0.001953125 : f32
    %11 = arith.mulf %5, %cst_3 : f32
    %cst_4 = arith.constant 0.001953125 : f32
    %12 = arith.mulf %10, %cst_4 : f32
    %13 = arith.mulf %11, %11 : f32
    %14 = arith.subf %12, %13 : f32
    %cst_5 = arith.constant 0.000000e+00 : f32
    %15 = arith.maximumf %14, %cst_5 : f32
    %cst_6 = arith.constant 9.99999993E-9 : f32
    %16 = arith.addf %15, %cst_6 : f32
    %17 = math.sqrt %16 : f32
    %cst_7 = arith.constant 1.000000e+00 : f32
    %18 = arith.divf %cst_7, %17 : f32
    %c0_8 = arith.constant 0 : index
    %c0_9 = arith.constant 0 : index
    %19 = vector.load %arg2[%c0_8, %c0_9] : memref<32x1xf32, #tpu.memory_space<vmem>>, vector<32x1xf32>
    %20 = vector.broadcast %18 : f32 to vector<32x1xf32>
    %21 = arith.mulf %19, %20 : vector<32x1xf32>
    %c0_10 = arith.constant 0 : index
    %c0_11 = arith.constant 0 : index
    %22 = vector.load %arg3[%c0_10, %c0_11] : memref<32x1xf32, #tpu.memory_space<vmem>>, vector<32x1xf32>
    %23 = vector.broadcast %11 : f32 to vector<32x1xf32>
    %24 = arith.mulf %23, %21 : vector<32x1xf32>
    %25 = arith.subf %22, %24 : vector<32x1xf32>
    %26 = vector.broadcast %21 : vector<32x1xf32> to vector<32x16xf32>
    %27 = arith.mulf %1, %26 : vector<32x16xf32>
    %28 = vector.broadcast %25 : vector<32x1xf32> to vector<32x16xf32>
    %29 = arith.addf %27, %28 : vector<32x16xf32>
    %c0_12 = arith.constant 0 : index
    %c0_13 = arith.constant 0 : index
    %c0_14 = arith.constant 0 : index
    %30 = vector.load %arg4[%c0_12, %c0_13, %c0_14] : memref<1x32x16xf32, #tpu.memory_space<vmem>>, vector<1x32x16xf32>
    %31 = vector.shape_cast %30 : vector<1x32x16xf32> to vector<32x16xf32>
    %32 = vector.shape_cast %29 : vector<32x16xf32> to vector<1x32x16xf32>
    tpu.vector_store %arg4[%c0_12, %c0_13, %c0_14], %32 {strides = array<i32>} : memref<1x32x16xf32, #tpu.memory_space<vmem>>, vector<1x32x16xf32>,
    return
  }
  func.func @transform_0(%arg0: i32) -> (i32, i32, i32) {
    %c0_i32 = arith.constant 0 : i32
    %c0_i32_0 = arith.constant 0 : i32
    %c0_i32_1 = arith.constant 0 : i32
    return %arg0, %c0_i32, %c0_i32_0 : i32, i32, i32
  }
  func.func @transform_1(%arg0: i32) -> (i32, i32) {
    %c0_i32 = arith.constant 0 : i32
    %c0_i32_0 = arith.constant 0 : i32
    %c0_i32_1 = arith.constant 0 : i32
    return %c0_i32, %c0_i32_0 : i32, i32
  }
  func.func @transform_2(%arg0: i32) -> (i32, i32) {
    %c0_i32 = arith.constant 0 : i32
    %c0_i32_0 = arith.constant 0 : i32
    %c0_i32_1 = arith.constant 0 : i32
    return %c0_i32, %c0_i32_0 : i32, i32
  }
  func.func @transform_3(%arg0: i32) -> (i32, i32, i32) {
    %c0_i32 = arith.constant 0 : i32
    %c0_i32_0 = arith.constant 0 : i32
    %c0_i32_1 = arith.constant 0 : i32
    return %arg0, %c0_i32, %c0_i32_0 : i32, i32, i32
  }
}

</mosaic_0001>

<llo_original>
// kernel: tpu_custom_call.1
$region0: #{tpu_custom_call.1}
  #allocation0 [shape = 'u32[]', space=smem, size = 0x4, offset = 0x4, fixed_abs, tag = 'smem constant byte address 0x4 - core index']
  #allocation1 [shape = 'u32[144,128]{1,0:T(1,128)}', space=vmem, size = 0x12000, scoped, tag = 'internal scratch']
  %s0 = inlined_call_operand.vmem [shape: f32[2,32,16], index: 0, kind: input, shape index: {}]
  %s1 = inlined_call_operand.vmem [shape: f32[32,1], index: 1, kind: input, shape index: {}]
  %s2 = inlined_call_operand.vmem [shape: f32[32,1], index: 2, kind: input, shape index: {}]
  %s3 = inlined_call_operand.vmem [shape: f32[2,32,16], index: 3, kind: output, shape index: {}]
  %s4 = sld [smem:[#allocation0]]
  $region45: #{tpu_custom_call.1} parent=0
    _
  %s6 = ssub.s32 1, %s4
  %s7 = scalar_select 0, %s6, %s4
  loop: start=0, step=1, limit=4
  $region2: #{tpu_custom_call.1} parent=0 // loop_pre_header
    _
  $region3: #{tpu_custom_call.1} parent=0 // loop_header
    %s9 = sphi 0, %s13
    %p10 = scmp.ge.s32.totalorder %s9, 4
    %s19 = sphi 0, %s21
    %s22 = sphi 0, %s19
    %s23 = sphi 0, %s22
    %s39 = sphi 0, %s23
    %s43 = sphi 0, %s43
    %s45 = sphi 0, %s43
    %s46 = sphi 0, %s45
    %s60 = sphi 0, %s46
    %s64 = sphi 0, %s64
    %s66 = sphi 0, %s64
    %s67 = sphi 0, %s66
    %s81 = sphi 0, %s67
    %s87 = sphi 0, %s89
    %s90 = sphi 0, %s87
    %s91 = sphi 0, %s90
    %s107 = sphi 0, %s91
  $region4: #{tpu_custom_call.1} parent=0 // loop_header_branch
    %12 = sbr.rel (%p10) target = $region8
  $region5: #{tpu_custom_call.1} parent=0 // loop_body
    %s14 = ssub.s32 %s9, 1
    %s15 = ssub.s32 %s9, 2
    %s16 = sadd.s32 %s9, 1
    %s17 = ssub.s32 %s9, %s16
    %p18 = scmp.eq.s32.totalorder %s17, 0
    %s20 = sadd.s32 %s19, 1
    %s21 = scalar_select %p18, %s19, %s20
    %p24 = pneg %p18
    %p25 = scmp.eq.s32.totalorder %s9, 1
    %p26 = por %p24, %p25
    %p27 = scmp.ne.s32.totalorder %s19, %s22
    %p28 = scmp.eq.s32.totalorder %s9, 0
    %p29 = por %p27, %p28
    %p30 = scmp.ne.s32.totalorder %s19, %s22
    %p31 = scmp.eq.s32.totalorder %s14, 1
    %p32 = por %p30, %p31
    %p33 = scmp.ne.s32.totalorder %s22, %s23
    %p34 = scmp.eq.s32.totalorder %s14, 0
    %p35 = por %p33, %p34
    %p36 = scmp.ne.s32.totalorder %s22, %s23
    %p37 = scmp.eq.s32.totalorder %s15, 1
    %p38 = por %p36, %p37
    %p40 = scmp.ne.s32.totalorder %s23, %s39
    %p41 = scmp.eq.s32.totalorder %s15, 0
    %p42 = por %p40, %p41
    %s44 = sadd.s32 %s43, 1
    %p47 = scmp.eq.s32.totalorder %s9, 1
    %p48 = scmp.ne.s32.totalorder %s43, %s45
    %p49 = scmp.eq.s32.totalorder %s9, 0
    %p50 = por %p48, %p49
    %p51 = scmp.ne.s32.totalorder %s43, %s45
    %p52 = scmp.eq.s32.totalorder %s14, 1
    %p53 = por %p51, %p52
    %p54 = scmp.ne.s32.totalorder %s45, %s46
    %p55 = scmp.eq.s32.totalorder %s14, 0
    %p56 = por %p54, %p55
    %p57 = scmp.ne.s32.totalorder %s45, %s46
    %p58 = scmp.eq.s32.totalorder %s15, 1
    %p59 = por %p57, %p58
    %p61 = scmp.ne.s32.totalorder %s46, %s60
    %p62 = scmp.eq.s32.totalorder %s15, 0
    %p63 = por %p61, %p62
    %s65 = sadd.s32 %s64, 1
    %p68 = scmp.eq.s32.totalorder %s9, 1
    %p69 = scmp.ne.s32.totalorder %s64, %s66
    %p70 = scmp.eq.s32.totalorder %s9, 0
    %p71 = por %p69, %p70
    %p72 = scmp.ne.s32.totalorder %s64, %s66
    %p73 = scmp.eq.s32.totalorder %s14, 1
    %p74 = por %p72, %p73
    %p75 = scmp.ne.s32.totalorder %s66, %s67
    %p76 = scmp.eq.s32.totalorder %s14, 0
    %p77 = por %p75, %p76
    %p78 = scmp.ne.s32.totalorder %s66, %s67
    %p79 = scmp.eq.s32.totalorder %s15, 1
    %p80 = por %p78, %p79
    %p82 = scmp.ne.s32.totalorder %s67, %s81
    %p83 = scmp.eq.s32.totalorder %s15, 0
    %p84 = por %p82, %p83
    %s85 = ssub.s32 %s9, %s16
    %p86 = scmp.eq.s32.totalorder %s85, 0
    %s88 = sadd.s32 %s87, 1
    %s89 = scalar_select %p86, %s87, %s88
    %p92 = pneg %p86
    %p93 = scmp.eq.s32.totalorder %s9, 1
    %p94 = por %p92, %p93
    %p95 = scmp.ne.s32.totalorder %s87, %s90
    %p96 = scmp.eq.s32.totalorder %s9, 0
    %p97 = por %p95, %p96
    %p98 = scmp.ne.s32.totalorder %s87, %s90
    %p99 = scmp.eq.s32.totalorder %s14, 1
    %p100 = por %p98, %p99
    %p101 = scmp.ne.s32.totalorder %s90, %s91
    %p102 = scmp.eq.s32.totalorder %s14, 0
    %p103 = por %p101, %p102
    %p104 = scmp.ne.s32.totalorder %s90, %s91
    %p105 = scmp.eq.s32.totalorder %s15, 1
    %p106 = por %p104, %p105
    %p108 = scmp.ne.s32.totalorder %s91, %s107
    %p109 = scmp.eq.s32.totalorder %s15, 0
    %p110 = por %p108, %p109
    %p111 = scmp.le.s32.totalorder 1, %s9
    %p112 = scmp.lt.s32.totalorder %s9, 3
    %p113 = pnand %p111, %p112
    %p114 = pneg %p113
    // Predicated region
    $region9: #{tpu_custom_call.1} parent=5 // pred_check
      _
    $region10: #{tpu_custom_call.1} parent=5 // pred_check_branch
      %116 = sbr.rel (%p113) target = $region12
    $region11: #{tpu_custom_call.1} parent=5 // pred_region
      %s117 = ssub.s32 %s9, 1
      // Predicated region
      $region13: #{tpu_custom_call.1} parent=11 // pred_check
        %p118 = pneg %p56
      $region14: #{tpu_custom_call.1} parent=11 // pred_check_branch
        %120 = sbr.rel (%p118) target = $region16
      $region15: #{tpu_custom_call.1} parent=11 // pred_region
        _
      $region16: #{tpu_custom_call.1} parent=11 // pred_fallthru
        _
      // Predicated region
      $region17: #{tpu_custom_call.1} parent=11 // pred_check
        %p121 = pneg %p77
      $region18: #{tpu_custom_call.1} parent=11 // pred_check_branch
        %123 = sbr.rel (%p121) target = $region20
      $region19: #{tpu_custom_call.1} parent=11 // pred_region
        _
      $region20: #{tpu_custom_call.1} parent=11 // pred_fallthru
        _
    $region12: #{tpu_custom_call.1} parent=5 // pred_fallthru
      _
    %p124 = scmp.lt.s32.totalorder %s9, 2
    // Predicated region
    $region21: #{tpu_custom_call.1} parent=5 // pred_check
      %p125 = pneg %p124
    $region22: #{tpu_custom_call.1} parent=5 // pred_check_branch
      %127 = sbr.rel (%p125) target = $region24
    $region23: #{tpu_custom_call.1} parent=5 // pred_region
      // Predicated region
      $region25: #{tpu_custom_call.1} parent=23 // pred_check
        %p128 = pneg %p29
      $region26: #{tpu_custom_call.1} parent=23 // pred_check_branch
        %130 = sbr.rel (%p128) target = $region28
      $region27: #{tpu_custom_call.1} parent=23 // pred_region
        %p131 = scmp.lt.s32.totalorder %s9, 1
        %s132 = scalar_select %p131, %s9, 1
        %s133 = smul.addr %s132, 4
        %s134 = smul.addr %s133, 8
        %s135 = scalar_lea.vmem %s0, %s134
      $region28: #{tpu_custom_call.1} parent=23 // pred_fallthru
        _
    $region24: #{tpu_custom_call.1} parent=5 // pred_fallthru
      _
    %p136 = scmp.le.s32.totalorder 1, %s9
    %p137 = scmp.lt.s32.totalorder %s9, 3
    %p138 = pnand %p136, %p137
    %p139 = pneg %p138
    // Predicated region
    $region29: #{tpu_custom_call.1} parent=5 // pred_check
      _
    $region30: #{tpu_custom_call.1} parent=5 // pred_check_branch
      %141 = sbr.rel (%p138) target = $region32
    $region31: #{tpu_custom_call.1} parent=5 // pred_region
      %s142 = ssub.s32 %s9, 1
      %p143 = scmp.lt.s32.totalorder %s14, 1
      %s144 = scalar_select %p143, %s14, 1
      %s145 = smul.addr %s144, 4
      %s146 = smul.addr %s145, 8
      %s147 = scalar_lea.vmem %s0, %s146
      %p148 = pneg %p35
      %p149 = pneg %p32
      %p150 = pneg %p56
      %p151 = pneg %p53
      %p152 = pneg %p77
      %p153 = pneg %p74
      %p154 = pneg %p103
      %p155 = pneg %p100
      %p156 = scmp.lt.s32.totalorder %s14, 1
      %s157 = scalar_select %p156, %s14, 1
      %s158 = smul.addr %s157, 4
      %s159 = smul.addr %s158, 8
      %s160 = scalar_lea.vmem %s3, %s159
      %p161 = scmp.lt.s32.totalorder %s14, 1
      %s162 = scalar_select %p161, %s14, 1
      %s163 = smul.addr %s162, 4
      %s164 = smul.addr %s163, 8
      %s165 = scalar_lea.vmem %s0, %s164
      %p166 = scmp.lt.s32.totalorder %s14, 1
      %s167 = scalar_select %p166, %s14, 1
      %s168 = smul.addr %s167, 4
      %s169 = smul.addr %s168, 8
      %s170 = scalar_lea.vmem %s3, %s169
      %v171 = vld [vmem:[%s165] sm:$0xff]
      %v172 = vld [vmem:[%s165 + $0x8] sm:$0xff]
      %v173 = vld [vmem:[%s165 + $0x10] sm:$0xff]
      %v174 = vld [vmem:[%s165 + $0x18] sm:$0xff]
      %vm175 = vcmask 130048
      %v176 = vsel %vm175, %v171, 0.0
      %v177 = vsel %vm175, %v172, 0.0
      %v178 = vadd.f32 %v176, %v177
      %v179 = vsel %vm175, %v173, 0.0
      %v180 = vadd.f32 %v178, %v179
      %v181 = vsel %vm175, %v174, 0.0
      %v182 = vadd.f32 %v180, %v181
      %183 = vadd.xlane.f32.xlu0 %v182
      %v184 = vpop.xlane.xlu0 %183
      %v185 = vrot.slane %v184, 4
      %v186 = vadd.f32 %v184, %v185
      %v187 = vrot.slane %v186, 2
      %v188 = vadd.f32 %v186, %v187
      %v189 = vrot.slane %v188, 1
      %v190 = vadd.f32 %v188, %v189
      %s191 = vtos %v190
      %v192 = vmul.f32 %v171, %v171
      %v193 = vmul.f32 %v172, %v172
      %v194 = vmul.f32 %v173, %v173
      %v195 = vmul.f32 %v174, %v174
      %v196 = vsel %vm175, %v192, 0.0
      %v197 = vsel %vm175, %v193, 0.0
      %v198 = vadd.f32 %v196, %v197
      %v199 = vsel %vm175, %v194, 0.0
      %v200 = vadd.f32 %v198, %v199
      %v201 = vsel %vm175, %v195, 0.0
      %v202 = vadd.f32 %v200, %v201
      %203 = vadd.xlane.f32.xlu0 %v202
      %v204 = vpop.xlane.xlu0 %203
      %v205 = vrot.slane %v204, 4
      %v206 = vadd.f32 %v204, %v205
      %v207 = vrot.slane %v206, 2
      %v208 = vadd.f32 %v206, %v207
      %v209 = vrot.slane %v208, 1
      %v210 = vadd.f32 %v208, %v209
      %s211 = vtos %v210
      %s212 = smul.f32 %s191, 0.001953125
      %s213 = smul.f32 %s211, 0.001953125
      %s214 = smul.f32 %s212, %s212
      %s215 = ssub.f32 %s213, %s214
      %s216 = smax.f32 %s215, 0.0
      %s217 = sadd.f32 %s216, 1e-08
      %v218 = vstv %s217
      %v219 = vrsqrt.pop %v218
      %v220 = vmul.f32 %v218, %v219
      %vm221 = vcmp.eq.f32.partialorder %v218, inf
      %v222 = vsel %vm221, %v218, %v220
      %vm223 = vcmp.eq.f32.partialorder %v218, 0.0
      %v224 = vand.u32 %v218, 2147483648
      %v225 = vsel %vm223, %v224, %v222
      %s226 = vtos %v225
      %v227 = vstv %s226
      %v228 = vrcp.pop %v227
      %s229 = vtos %v228
      %v230 = vld [vmem:[%s1] sm:$0xff]
      %v231 = vld [vmem:[%s1 + $0x8] sm:$0xff]
      %v232 = vld [vmem:[%s1 + $0x10] sm:$0xff]
      %v233 = vld [vmem:[%s1 + $0x18] sm:$0xff]
      %v234 = vstv %s229
      %v235 = vmul.f32 %v230, %v234
      %v236 = vmul.f32 %v231, %v234
      %v237 = vmul.f32 %v232, %v234
      %v238 = vmul.f32 %v233, %v234
      %v239 = vld [vmem:[%s2] sm:$0xff]
      %v240 = vld [vmem:[%s2 + $0x8] sm:$0xff]
      %v241 = vld [vmem:[%s2 + $0x10] sm:$0xff]
      %v242 = vld [vmem:[%s2 + $0x18] sm:$0xff]
      %v243 = vstv %s212
      %v244 = vmul.f32 %v243, %v235
      %v245 = vmul.f32 %v243, %v236
      %v246 = vmul.f32 %v243, %v237
      %v247 = vmul.f32 %v243, %v238
      %v248 = vsub.f32 %v239, %v244
      %v249 = vsub.f32 %v240, %v245
      %v250 = vsub.f32 %v241, %v246
      %v251 = vsub.f32 %v242, %v247
      %253 = vset.pattern.permute.xlu0 0
      %254 = vperm.xlu0 %253, %v235
      %v255 = vpop.permute.xlu0 %254
      %258 = vset.pattern.permute.xlu0 0
      %259 = vperm.xlu0 %258, %v236
      %v260 = vpop.permute.xlu0 %259
      %263 = vset.pattern.permute.xlu0 0
      %264 = vperm.xlu0 %263, %v237
      %v265 = vpop.permute.xlu0 %264
      %268 = vset.pattern.permute.xlu0 0
      %269 = vperm.xlu0 %268, %v238
      %v270 = vpop.permute.xlu0 %269
      %v272 = vmul.f32 %v171, %v255
      %v273 = vmul.f32 %v172, %v260
      %v274 = vmul.f32 %v173, %v265
      %v275 = vmul.f32 %v174, %v270
      %277 = vset.pattern.permute.xlu0 0
      %278 = vperm.xlu0 %277, %v248
      %v279 = vpop.permute.xlu0 %278
      %282 = vset.pattern.permute.xlu0 0
      %283 = vperm.xlu0 %282, %v249
      %v284 = vpop.permute.xlu0 %283
      %287 = vset.pattern.permute.xlu0 0
      %288 = vperm.xlu0 %287, %v250
      %v289 = vpop.permute.xlu0 %288
      %292 = vset.pattern.permute.xlu0 0
      %293 = vperm.xlu0 %292, %v251
      %v294 = vpop.permute.xlu0 %293
      %v296 = vadd.f32 %v272, %v279
      %v297 = vadd.f32 %v273, %v284
      %v298 = vadd.f32 %v274, %v289
      %v299 = vadd.f32 %v275, %v294
      %300 = vst.msk [vmem:[%s170] sm:$0xff] %vm175, %v296
      %301 = vst.msk [vmem:[%s170 + $0x8] sm:$0xff] %vm175, %v297
      %302 = vst.msk [vmem:[%s170 + $0x10] sm:$0xff] %vm175, %v298
      %303 = vst.msk [vmem:[%s170 + $0x18] sm:$0xff] %vm175, %v299
      %p304 = scmp.lt.s32.totalorder %s14, 1
      %s305 = scalar_select %p304, %s14, 1
      %s306 = smul.addr %s305, 4
      %s307 = smul.addr %s306, 8
      %s308 = scalar_lea.vmem %s3, %s307
      // Predicated region
      $region33: #{tpu_custom_call.1} parent=31 // pred_check
        %p309 = pneg %p100
      $region34: #{tpu_custom_call.1} parent=31 // pred_check_branch
        %311 = sbr.rel (%p309) target = $region36
      $region35: #{tpu_custom_call.1} parent=31 // pred_region
        _
      $region36: #{tpu_custom_call.1} parent=31 // pred_fallthru
        _
    $region32: #{tpu_custom_call.1} parent=5 // pred_fallthru
      _
    %p312 = scmp.le.s32.totalorder 2, %s9
    // Predicated region
    $region37: #{tpu_custom_call.1} parent=5 // pred_check
      %p313 = pneg %p312
    $region38: #{tpu_custom_call.1} parent=5 // pred_check_branch
      %315 = sbr.rel (%p313) target = $region40
    $region39: #{tpu_custom_call.1} parent=5 // pred_region
      %s316 = ssub.s32 %s9, 2
      // Predicated region
      $region41: #{tpu_custom_call.1} parent=39 // pred_check
        %p317 = pneg %p106
      $region42: #{tpu_custom_call.1} parent=39 // pred_check_branch
        %319 = sbr.rel (%p317) target = $region44
      $region43: #{tpu_custom_call.1} parent=39 // pred_region
        %p320 = scmp.lt.s32.totalorder %s15, 1
        %s321 = scalar_select %p320, %s15, 1
        %s322 = smul.addr %s321, 4
        %s323 = smul.addr %s322, 8
        %s324 = scalar_lea.vmem %s3, %s323
      $region44: #{tpu_custom_call.1} parent=39 // pred_fallthru
        _
    $region40: #{tpu_custom_call.1} parent=5 // pred_fallthru
      _
  $region6: #{tpu_custom_call.1} parent=0 // loop_footer
    %s13 = sadd.s32 1, %s9
  $region7: #{tpu_custom_call.1} parent=0 // loop_footer_branch
    %8 = sbr.rel target = $region3
  $region8: #{tpu_custom_call.1} parent=0 // loop_exit
    _

</llo_original>
